<compile_context>
chip_gen: v7x
topology: tpu7x:2x2x1
jax: 0.10.0
libtpu: 0.0.40
codegen_flags: <defaults>
</compile_context>

<pallas_src>
import functools

import numpy as np
import jax
import jax.numpy as jnp
from jax import lax
from jax.experimental import pallas as pl
from jax.experimental.pallas import tpu as pltpu


def _dice_kernel(logits_ref, target_ref, out_ref, inter_acc, card_acc,
                 *, S_total, TS):
    """One grid step = one (C, TS) spatial chunk of one batch element.

    logits_ref: (1, C, TS)  float VMEM tile (native dtype)
    target_ref: (1, 1, TS)  int   VMEM tile (native dtype)
    out_ref:    (1, C, 1)   float32 per-sample dice scores (written on last S step)
    inter_acc:  (C, 1)      float32 VMEM scratch (intersection accumulator)
    card_acc:   (C, 1)      float32 VMEM scratch (cardinality accumulator)
    """
    s = pl.program_id(1)
    num_s = pl.num_programs(1)

    @pl.when(s == 0)
    def _():
        inter_acc[...] = jnp.zeros_like(inter_acc)
        card_acc[...] = jnp.zeros_like(card_acc)

    x = logits_ref[0]                        # (C, TS), native dtype
    t = target_ref[0].astype(jnp.int32)      # (1, TS)
    C = x.shape[0]

    class_ids = lax.broadcasted_iota(jnp.int32, (C, TS), 0)       # (C, TS)
    # Global spatial position -> mask out-of-bounds lanes of the last tile.
    pos = s * TS + lax.broadcasted_iota(jnp.int32, (1, TS), 1)    # (1, TS)
    valid = pos < S_total                                         # (1, TS) bool

    # First-max argmax over the class (sublane) axis, torch/jnp tie-break.
    m = jnp.max(x, axis=0, keepdims=True)                         # (1, TS)
    is_max = x == m                                               # (C, TS)
    pred_idx = jnp.min(jnp.where(is_max, class_ids, C),
                       axis=0, keepdims=True)                     # (1, TS)

    pred_mask = (class_ids == pred_idx) & valid                   # (C, TS) bool
    tgt_mask = (class_ids == t) & valid                           # (C, TS) bool

    inter = jnp.sum((pred_mask & tgt_mask).astype(jnp.float32),
                    axis=1, keepdims=True)                        # (C, 1)
    card = (jnp.sum(pred_mask.astype(jnp.float32), axis=1, keepdims=True)
            + jnp.sum(tgt_mask.astype(jnp.float32), axis=1, keepdims=True))

    inter_acc[...] += inter
    card_acc[...] += card

    @pl.when(s == num_s - 1)
    def _():
        score = 2.0 * inter_acc[...] / jnp.maximum(card_acc[...], 1.0)  # (C, 1)
        out_ref[0] = score


def _choose_spatial_tile(C, S, bytes_per_elem):
    """Pick a lane-aligned spatial tile (~2 MiB of logits per step)."""
    lane = 128
    if S <= lane:
        return S  # full spatial axis in one block
    target_bytes = 2 * 1024 * 1024
    ts = (target_bytes // max(1, C * bytes_per_elem)) // lane * lane
    ts = max(lane, ts)
    s_ceil = ((S + lane - 1) // lane) * lane
    return min(ts, s_ceil)


def dice(output, target):
    """Pallas Dice metric.

    Args:
      output: (N, C, *spatial) float array (logits), any float dtype.
      target: (N, 1, *spatial) integer array of class indices.

    Returns:
      (C,) float32 dice score per class (mean over batch).
    """
    N, C = output.shape[0], output.shape[1]
    spatial = output.shape[2:]
    S = int(np.prod(spatial)) if spatial else 1

    # Pure metadata reshapes (contiguous NCHW); no dtype casts here.
    out_flat = output.reshape(N, C, S)
    tgt_flat = target.reshape(N, 1, S)

    TS = _choose_spatial_tile(C, S, out_flat.dtype.itemsize)
    num_s = pl.cdiv(S, TS)

    kernel = functools.partial(_dice_kernel, S_total=S, TS=TS)

    per_sample = pl.pallas_call(
        kernel,
        out_shape=jax.ShapeDtypeStruct((N, C, 1), jnp.float32),
        grid_spec=pltpu.PrefetchScalarGridSpec(
            num_scalar_prefetch=0,
            grid=(N, num_s),
            in_specs=[
                pl.BlockSpec((1, C, TS), lambda n, s: (n, 0, s)),
                pl.BlockSpec((1, 1, TS), lambda n, s: (n, 0, s)),
            ],
            out_specs=pl.BlockSpec((1, C, 1), lambda n, s: (n, 0, 0)),
            scratch_shapes=[
                pltpu.VMEM((C, 1), jnp.float32),   # intersection accumulator
                pltpu.VMEM((C, 1), jnp.float32),   # cardinality accumulator
            ],
        ),
        compiler_params=pltpu.CompilerParams(
            # batch axis can shard across TensorCores; S axis is a reduction.
            dimension_semantics=("parallel", "arbitrary")),
    )(out_flat, tgt_flat)

    # Tiny (N, C) mean over the batch done in plain JAX.
    return jnp.mean(per_sample[:, :, 0], axis=0)


def dice_ref(output, target):
    """Pure-JAX reference reproducing the torch module."""
    C = output.shape[1]
    pred_idx = jnp.argmax(output, axis=1)                 # (N, *)
    pred = jax.nn.one_hot(pred_idx, C, axis=1)            # (N, C, *)
    tgt = jax.nn.one_hot(target[:, 0], C, axis=1)         # (N, C, *)
    red = tuple(range(2, output.ndim))
    inter = jnp.sum(pred * tgt, axis=red)
    card = jnp.sum(pred, axis=red) + jnp.sum(tgt, axis=red)
    return jnp.mean(2.0 * inter / jnp.maximum(card, 1.0), axis=0)


if __name__ == "__main__":
    key = jax.random.PRNGKey(0)
    k1, k2 = jax.random.split(key)

    N, C, H, W = 2, 4, 16, 16
    output = jax.random.normal(k1, (N, C, H, W), dtype=jnp.float32)
    target = jax.random.randint(k2, (N, 1, H, W), 0, C, dtype=jnp.int32)

    score = dice(output, target)
    jax.block_until_ready(score)

    expected = dice_ref(output, target)
    np.testing.assert_allclose(np.asarray(score), np.asarray(expected),
                               rtol=1e-5, atol=1e-5)
    print("KERNEL_OK")
</pallas_src>

<mosaic_0001>
module attributes {stable_mosaic.version = 11 : i64} {
  func.func @_dice_kernel(%arg0: i32, %arg1: i32, %arg2: memref<1x4x256xf32, #tpu.memory_space<vmem>>, %arg3: memref<1x1x256xi32, #tpu.memory_space<vmem>>, %arg4: memref<1x4x1xf32, #tpu.memory_space<vmem>>, %arg5: memref<4x1xf32, #tpu.memory_space<vmem>>, %arg6: memref<4x1xf32, #tpu.memory_space<vmem>>) attributes {dimension_semantics = [#tpu.dimension_semantics<parallel>, #tpu.dimension_semantics<arbitrary>], iteration_bounds = array<i64: 2, 1>, scalar_prefetch = 0 : i64, scratch_operands = 2 : i64, tpu.core_type = #tpu.core_type<tc>, window_params = [{transform_indices = @transform_0, window_bounds = array<i64: 1, 4, 256>}, {transform_indices = @transform_1, window_bounds = array<i64: 1, 1, 256>}, {transform_indices = @transform_2, window_bounds = array<i64: 1, 4, 1>}]} {
    %c0_i32 = arith.constant 0 : i32
    %0 = arith.cmpi eq, %arg1, %c0_i32 : i32
    %1 = arith.extui %0 : i1 to i32
    %c0_i32_0 = arith.constant 0 : i32
    %2 = arith.cmpi ne, %1, %c0_i32_0 : i32
    scf.if %2 {
      %cst_21 = arith.constant 0.000000e+00 : f32
      %53 = vector.broadcast %cst_21 : f32 to vector<4x1xf32>
      %c0_22 = arith.constant 0 : index
      %c0_23 = arith.constant 0 : index
      %54 = vector.load %arg5[%c0_22, %c0_23] : memref<4x1xf32, #tpu.memory_space<vmem>>, vector<4x1xf32>
      tpu.vector_store %arg5[%c0_22, %c0_23], %53 {strides = array<i32>} : memref<4x1xf32, #tpu.memory_space<vmem>>, vector<4x1xf32>,
      %cst_24 = arith.constant 0.000000e+00 : f32
      %55 = vector.broadcast %cst_24 : f32 to vector<4x1xf32>
      %c0_25 = arith.constant 0 : index
      %c0_26 = arith.constant 0 : index
      %56 = vector.load %arg6[%c0_25, %c0_26] : memref<4x1xf32, #tpu.memory_space<vmem>>, vector<4x1xf32>
      tpu.vector_store %arg6[%c0_25, %c0_26], %55 {strides = array<i32>} : memref<4x1xf32, #tpu.memory_space<vmem>>, vector<4x1xf32>,
    } else {
    }
    %c0 = arith.constant 0 : index
    %c0_1 = arith.constant 0 : index
    %c0_2 = arith.constant 0 : index
    %3 = vector.load %arg2[%c0, %c0_1, %c0_2] : memref<1x4x256xf32, #tpu.memory_space<vmem>>, vector<1x4x256xf32>
    %4 = vector.shape_cast %3 : vector<1x4x256xf32> to vector<4x256xf32>
    %c0_3 = arith.constant 0 : index
    %c0_4 = arith.constant 0 : index
    %c0_5 = arith.constant 0 : index
    %5 = vector.load %arg3[%c0_3, %c0_4, %c0_5] : memref<1x1x256xi32, #tpu.memory_space<vmem>>, vector<1x1x256xi32>
    %6 = vector.shape_cast %5 : vector<1x1x256xi32> to vector<1x256xi32>
    %7 = tpu.iota {dimensions = array<i32: 0>} : vector<4x256xi32>
    %c256_i32 = arith.constant 256 : i32
    %8 = arith.muli %arg1, %c256_i32 : i32
    %9 = tpu.iota {dimensions = array<i32: 1>} : vector<1x256xi32>
    %10 = vector.broadcast %8 : i32 to vector<1x256xi32>
    %11 = arith.addi %10, %9 : vector<1x256xi32>
    %c256_i32_6 = arith.constant 256 : i32
    %12 = vector.broadcast %c256_i32_6 : i32 to vector<1x256xi32>
    %13 = arith.cmpi slt, %11, %12 : vector<1x256xi32>
    %cst = arith.constant dense<0xFF800000> : vector<256xf32>
    %14 = vector.multi_reduction <maximumf>, %4, %cst [0] : vector<4x256xf32> to vector<256xf32>
    %15 = vector.shape_cast %14 : vector<256xf32> to vector<1x256xf32>
    %16 = vector.broadcast %15 : vector<1x256xf32> to vector<4x256xf32>
    %17 = arith.cmpf oeq, %4, %16 : vector<4x256xf32>
    %c4_i32 = arith.constant 4 : i32
    %18 = vector.broadcast %c4_i32 : i32 to vector<4x256xi32>
    %19 = arith.select %17, %7, %18 : vector<4x256xi1>, vector<4x256xi32>
    %cst_7 = arith.constant dense<2147483647> : vector<256xi32>
    %20 = vector.multi_reduction <minsi>, %19, %cst_7 [0] : vector<4x256xi32> to vector<256xi32>
    %21 = vector.shape_cast %20 : vector<256xi32> to vector<1x256xi32>
    %22 = vector.broadcast %21 : vector<1x256xi32> to vector<4x256xi32>
    %23 = arith.cmpi eq, %7, %22 : vector<4x256xi32>
    %24 = vector.broadcast %13 : vector<1x256xi1> to vector<4x256xi1>
    %25 = arith.andi %23, %24 : vector<4x256xi1>
    %26 = vector.broadcast %6 : vector<1x256xi32> to vector<4x256xi32>
    %27 = arith.cmpi eq, %7, %26 : vector<4x256xi32>
    %28 = vector.broadcast %13 : vector<1x256xi1> to vector<4x256xi1>
    %29 = arith.andi %27, %28 : vector<4x256xi1>
    %30 = arith.andi %25, %29 : vector<4x256xi1>
    %31 = arith.extui %30 : vector<4x256xi1> to vector<4x256xi32>
    %32 = arith.sitofp %31 : vector<4x256xi32> to vector<4x256xf32>
    %cst_8 = arith.constant dense<0.000000e+00> : vector<4xf32>
    %33 = vector.multi_reduction <add>, %32, %cst_8 [1] : vector<4x256xf32> to vector<4xf32>
    %34 = vector.shape_cast %33 : vector<4xf32> to vector<4x1xf32>
    %35 = arith.extui %25 : vector<4x256xi1> to vector<4x256xi32>
    %36 = arith.sitofp %35 : vector<4x256xi32> to vector<4x256xf32>
    %cst_9 = arith.constant dense<0.000000e+00> : vector<4xf32>
    %37 = vector.multi_reduction <add>, %36, %cst_9 [1] : vector<4x256xf32> to vector<4xf32>
    %38 = vector.shape_cast %37 : vector<4xf32> to vector<4x1xf32>
    %39 = arith.extui %29 : vector<4x256xi1> to vector<4x256xi32>
    %40 = arith.sitofp %39 : vector<4x256xi32> to vector<4x256xf32>
    %cst_10 = arith.constant dense<0.000000e+00> : vector<4xf32>
    %41 = vector.multi_reduction <add>, %40, %cst_10 [1] : vector<4x256xf32> to vector<4xf32>
    %42 = vector.shape_cast %41 : vector<4xf32> to vector<4x1xf32>
    %43 = arith.addf %38, %42 : vector<4x1xf32>
    %c0_11 = arith.constant 0 : index
    %c0_12 = arith.constant 0 : index
    %44 = vector.load %arg5[%c0_11, %c0_12] : memref<4x1xf32, #tpu.memory_space<vmem>>, vector<4x1xf32>
    %45 = arith.addf %44, %34 : vector<4x1xf32>
    %c0_13 = arith.constant 0 : index
    %c0_14 = arith.constant 0 : index
    %46 = vector.load %arg5[%c0_13, %c0_14] : memref<4x1xf32, #tpu.memory_space<vmem>>, vector<4x1xf32>
    tpu.vector_store %arg5[%c0_13, %c0_14], %45 {strides = array<i32>} : memref<4x1xf32, #tpu.memory_space<vmem>>, vector<4x1xf32>,
    %c0_15 = arith.constant 0 : index
    %c0_16 = arith.constant 0 : index
    %47 = vector.load %arg6[%c0_15, %c0_16] : memref<4x1xf32, #tpu.memory_space<vmem>>, vector<4x1xf32>
    %48 = arith.addf %47, %43 : vector<4x1xf32>
    %c0_17 = arith.constant 0 : index
    %c0_18 = arith.constant 0 : index
    %49 = vector.load %arg6[%c0_17, %c0_18] : memref<4x1xf32, #tpu.memory_space<vmem>>, vector<4x1xf32>
    tpu.vector_store %arg6[%c0_17, %c0_18], %48 {strides = array<i32>} : memref<4x1xf32, #tpu.memory_space<vmem>>, vector<4x1xf32>,
    %c0_i32_19 = arith.constant 0 : i32
    %50 = arith.cmpi eq, %arg1, %c0_i32_19 : i32
    %51 = arith.extui %50 : i1 to i32
    %c0_i32_20 = arith.constant 0 : i32
    %52 = arith.cmpi ne, %51, %c0_i32_20 : i32
    scf.if %52 {
      %c0_21 = arith.constant 0 : index
      %c0_22 = arith.constant 0 : index
      %53 = vector.load %arg5[%c0_21, %c0_22] : memref<4x1xf32, #tpu.memory_space<vmem>>, vector<4x1xf32>
      %cst_23 = arith.constant 2.000000e+00 : f32
      %54 = vector.broadcast %cst_23 : f32 to vector<4x1xf32>
      %55 = arith.mulf %54, %53 : vector<4x1xf32>
      %c0_24 = arith.constant 0 : index
      %c0_25 = arith.constant 0 : index
      %56 = vector.load %arg6[%c0_24, %c0_25] : memref<4x1xf32, #tpu.memory_space<vmem>>, vector<4x1xf32>
      %cst_26 = arith.constant 1.000000e+00 : f32
      %57 = vector.broadcast %cst_26 : f32 to vector<4x1xf32>
      %58 = arith.maximumf %56, %57 : vector<4x1xf32>
      %59 = arith.divf %55, %58 : vector<4x1xf32>
      %c0_27 = arith.constant 0 : index
      %c0_28 = arith.constant 0 : index
      %c0_29 = arith.constant 0 : index
      %60 = vector.load %arg4[%c0_27, %c0_28, %c0_29] : memref<1x4x1xf32, #tpu.memory_space<vmem>>, vector<1x4x1xf32>
      %61 = vector.shape_cast %60 : vector<1x4x1xf32> to vector<4x1xf32>
      %62 = vector.shape_cast %59 : vector<4x1xf32> to vector<1x4x1xf32>
      tpu.vector_store %arg4[%c0_27, %c0_28, %c0_29], %62 {strides = array<i32>} : memref<1x4x1xf32, #tpu.memory_space<vmem>>, vector<1x4x1xf32>,
    } else {
    }
    return
  }
  func.func @transform_0(%arg0: i32, %arg1: i32) -> (i32, i32, i32) {
    %c0_i32 = arith.constant 0 : i32
    %c0_i32_0 = arith.constant 0 : i32
    return %arg0, %c0_i32, %arg1 : i32, i32, i32
  }
  func.func @transform_1(%arg0: i32, %arg1: i32) -> (i32, i32, i32) {
    %c0_i32 = arith.constant 0 : i32
    %c0_i32_0 = arith.constant 0 : i32
    return %arg0, %c0_i32, %arg1 : i32, i32, i32
  }
  func.func @transform_2(%arg0: i32, %arg1: i32) -> (i32, i32, i32) {
    %c0_i32 = arith.constant 0 : i32
    %c0_i32_0 = arith.constant 0 : i32
    %c0_i32_1 = arith.constant 0 : i32
    return %arg0, %c0_i32, %c0_i32_0 : i32, i32, i32
  }
}

</mosaic_0001>

<llo_original>
// kernel: tpu_custom_call.1
$region0: #{tpu_custom_call.1}
  #allocation0 [shape = 'u32[]', space=smem, size = 0x4, offset = 0x4, fixed_abs, tag = 'smem constant byte address 0x4 - core index']
  #allocation1 [shape = 'u32[144,128]{1,0:T(1,128)}', space=vmem, size = 0x12000, scoped, tag = 'internal scratch']
  #allocation2 [shape = 'f32[4,1]{1,0:T(4,128)}', space=vmem, size = 0x800, scoped, tag = 'scratch operand']
  #allocation3 [shape = 'f32[4,1]{1,0:T(4,128)}', space=vmem, size = 0x800, scoped, tag = 'scratch operand']
  %s0 = inlined_call_operand.hbm [shape: f32[2,4,256], index: 0, kind: input, shape index: {}]
  %s1 = inlined_call_operand.hbm [shape: s32[2,1,256], index: 1, kind: input, shape index: {}]
  %s2 = inlined_call_operand.vmem [shape: f32[2,4,1], index: 2, kind: output, shape index: {}]
  %s3 = sld [smem:[#allocation0]]
  $region57: #{tpu_custom_call.1} parent=0
    _
  %s5 = ssub.s32 1, %s3
  %s6 = scalar_select 0, %s5, %s3
  $region1: #{tpu_custom_call.1} parent=0
    #allocation4 [shape = 'u8[8192]{0}', space=vmem, size = 0x2000, scoped, tag = 'input window, operand 0']
    #allocation5 [shape = 's32[2]{0}', space=sflag, size = 0x8, scoped, tag = 'scoped memory for tpu_custom_call.1']
    #allocation6 [shape = 'u8[2048]{0}', space=vmem, size = 0x800, scoped, tag = 'input window, operand 1']
    #allocation7 [shape = 's32[2]{0}', space=sflag, size = 0x8, scoped, tag = 'scoped memory for tpu_custom_call.1']
    %7 = vsyncpa [#allocation5], 0
    %s8 = scalar_lea.sflag [#allocation5], 1
    %9 = vsyncpa %s8, 0
    %10 = vsyncpa [#allocation7], 0
    %s11 = scalar_lea.sflag [#allocation7], 1
    %12 = vsyncpa %s11, 0
    loop: start=0, step=1, limit=4
    $region2: #{tpu_custom_call.1} parent=1 // loop_pre_header
      _
    $region3: #{tpu_custom_call.1} parent=1 // loop_header
      %s14 = sphi 0, %s18
      %p15 = scmp.ge.s32.totalorder %s14, 4
      %s21 = sphi 0, %s33
      %s22 = sphi 0, %s29
      %s23 = sphi 0, %s21
      %s24 = sphi 0, %s22
      %s25 = sphi 0, %s23
      %s26 = sphi 0, %s24
      %s38 = sphi 0, %s40
      %s41 = sphi 0, %s38
      %s42 = sphi 0, %s41
      %s58 = sphi 0, %s42
      %s66 = sphi 0, %s68
      %s69 = sphi 0, %s66
      %s70 = sphi 0, %s69
      %s86 = sphi 0, %s70
      %s92 = sphi 0, %s94
      %s95 = sphi 0, %s92
      %s96 = sphi 0, %s95
      %s112 = sphi 0, %s96
    $region4: #{tpu_custom_call.1} parent=1 // loop_header_branch
      %17 = sbr.rel (%p15) target = $region8
    $region5: #{tpu_custom_call.1} parent=1 // loop_body
      %s19 = ssub.s32 %s14, 1
      %s20 = ssub.s32 %s14, 2
      %s27 = sadd.s32 1, %s22
      %p28 = scmp.ge.s32.totalorder %s27, 1
      %s29 = scalar_select %p28, 0, %s27
      %s30 = sadd.s32 1, %s21
      %s31 = scalar_select %p28, %s30, %s21
      %p32 = scmp.ge.s32.totalorder %s31, 2
      %s33 = scalar_select %p32, 0, %s31
      %s34 = ssub.s32 %s21, %s33
      %s35 = ssub.s32 %s22, %s29
      %s36 = sor.u32 %s34, %s35
      %p37 = scmp.eq.s32.totalorder %s36, 0
      %s39 = sadd.s32 %s38, 1
      %s40 = scalar_select %p37, %s38, %s39
      %p43 = pneg %p37
      %p44 = scmp.eq.s32.totalorder %s14, 1
      %p45 = por %p43, %p44
      %p46 = scmp.ne.s32.totalorder %s38, %s41
      %p47 = scmp.eq.s32.totalorder %s14, 0
      %p48 = por %p46, %p47
      %p49 = scmp.ne.s32.totalorder %s38, %s41
      %p50 = scmp.eq.s32.totalorder %s19, 1
      %p51 = por %p49, %p50
      %p52 = scmp.ne.s32.totalorder %s41, %s42
      %p53 = scmp.eq.s32.totalorder %s19, 0
      %p54 = por %p52, %p53
      %p55 = scmp.ne.s32.totalorder %s41, %s42
      %p56 = scmp.eq.s32.totalorder %s20, 1
      %p57 = por %p55, %p56
      %p59 = scmp.ne.s32.totalorder %s42, %s58
      %p60 = scmp.eq.s32.totalorder %s20, 0
      %p61 = por %p59, %p60
      %s62 = ssub.s32 %s21, %s33
      %s63 = ssub.s32 %s22, %s29
      %s64 = sor.u32 %s62, %s63
      %p65 = scmp.eq.s32.totalorder %s64, 0
      %s67 = sadd.s32 %s66, 1
      %s68 = scalar_select %p65, %s66, %s67
      %p71 = pneg %p65
      %p72 = scmp.eq.s32.totalorder %s14, 1
      %p73 = por %p71, %p72
      %p74 = scmp.ne.s32.totalorder %s66, %s69
      %p75 = scmp.eq.s32.totalorder %s14, 0
      %p76 = por %p74, %p75
      %p77 = scmp.ne.s32.totalorder %s66, %s69
      %p78 = scmp.eq.s32.totalorder %s19, 1
      %p79 = por %p77, %p78
      %p80 = scmp.ne.s32.totalorder %s69, %s70
      %p81 = scmp.eq.s32.totalorder %s19, 0
      %p82 = por %p80, %p81
      %p83 = scmp.ne.s32.totalorder %s69, %s70
      %p84 = scmp.eq.s32.totalorder %s20, 1
      %p85 = por %p83, %p84
      %p87 = scmp.ne.s32.totalorder %s70, %s86
      %p88 = scmp.eq.s32.totalorder %s20, 0
      %p89 = por %p87, %p88
      %s90 = ssub.s32 %s21, %s33
      %p91 = scmp.eq.s32.totalorder %s90, 0
      %s93 = sadd.s32 %s92, 1
      %s94 = scalar_select %p91, %s92, %s93
      %p97 = pneg %p91
      %p98 = scmp.eq.s32.totalorder %s14, 1
      %p99 = por %p97, %p98
      %p100 = scmp.ne.s32.totalorder %s92, %s95
      %p101 = scmp.eq.s32.totalorder %s14, 0
      %p102 = por %p100, %p101
      %p103 = scmp.ne.s32.totalorder %s92, %s95
      %p104 = scmp.eq.s32.totalorder %s19, 1
      %p105 = por %p103, %p104
      %p106 = scmp.ne.s32.totalorder %s95, %s96
      %p107 = scmp.eq.s32.totalorder %s19, 0
      %p108 = por %p106, %p107
      %p109 = scmp.ne.s32.totalorder %s95, %s96
      %p110 = scmp.eq.s32.totalorder %s20, 1
      %p111 = por %p109, %p110
      %p113 = scmp.ne.s32.totalorder %s96, %s112
      %p114 = scmp.eq.s32.totalorder %s20, 0
      %p115 = por %p113, %p114
      %p116 = scmp.le.s32.totalorder 1, %s14
      %p117 = scmp.lt.s32.totalorder %s14, 3
      %p118 = pnand %p116, %p117
      %p119 = pneg %p118
      // Predicated region
      $region9: #{tpu_custom_call.1} parent=5 // pred_check
        _
      $region10: #{tpu_custom_call.1} parent=5 // pred_check_branch
        %121 = sbr.rel (%p118) target = $region12
      $region11: #{tpu_custom_call.1} parent=5 // pred_region
        %s122 = ssub.s32 %s14, 1
      $region12: #{tpu_custom_call.1} parent=5 // pred_fallthru
        _
      %p123 = scmp.lt.s32.totalorder %s14, 2
      // Predicated region
      $region13: #{tpu_custom_call.1} parent=5 // pred_check
        %p124 = pneg %p123
      $region14: #{tpu_custom_call.1} parent=5 // pred_check_branch
        %126 = sbr.rel (%p124) target = $region16
      $region15: #{tpu_custom_call.1} parent=5 // pred_region
        // Predicated region
        $region17: #{tpu_custom_call.1} parent=15 // pred_check
          %p127 = pneg %p48
        $region18: #{tpu_custom_call.1} parent=15 // pred_check_branch
          %129 = sbr.rel (%p127) target = $region20
        $region19: #{tpu_custom_call.1} parent=15 // pred_region
          %s130 = sand.u32 %s38, 1
          %s131 = scalar_lea.sflag [#allocation5], %s130
          %s132 = sand.u32 %s38, 1
          %s133 = smul.addr %s132, 8
          %s134 = scalar_lea.vmem [#allocation4], %s133
          %s135 = smul.u32 2, %s22
          %s137 = ssub.s32 128, 128
          %138 = vsyncadd %s131, %s137
          %s139 = smul.addr %s21, 2
          %s140 = sadd.s32 %s135, %s139
          %s141 = smul.addr %s140, 64
          %s142 = scalar_lea.hbm %s0, %s141
          %s144 = sshll.u32 %s134, 4
          %s145 = int_to_ptr.vmem [resolvable:$true] %s144
          %147 = dma.hbm_to_vmem [thread:$0]  %s142, 128, %s145, %s131
        $region20: #{tpu_custom_call.1} parent=15 // pred_fallthru
          _
        // Predicated region
        $region21: #{tpu_custom_call.1} parent=15 // pred_check
          %p148 = pneg %p76
        $region22: #{tpu_custom_call.1} parent=15 // pred_check_branch
          %150 = sbr.rel (%p148) target = $region24
        $region23: #{tpu_custom_call.1} parent=15 // pred_region
          %s151 = sand.u32 %s66, 1
          %s152 = scalar_lea.sflag [#allocation7], %s151
          %s153 = sand.u32 %s66, 1
          %s154 = smul.addr %s153, 2
          %s155 = scalar_lea.vmem [#allocation6], %s154
          %s156 = smul.u32 2, %s22
          %s158 = ssub.s32 32, 32
          %159 = vsyncadd %s152, %s158
          %s160 = smul.addr %s21, 2
          %s161 = sadd.s32 %s156, %s160
          %s162 = smul.addr %s161, 16
          %s163 = scalar_lea.hbm %s1, %s162
          %s165 = sshll.u32 %s155, 4
          %s166 = int_to_ptr.vmem [resolvable:$true] %s165
          %168 = dma.hbm_to_vmem [thread:$0]  %s163, 32, %s166, %s152
        $region24: #{tpu_custom_call.1} parent=15 // pred_fallthru
          _
      $region16: #{tpu_custom_call.1} parent=5 // pred_fallthru
        _
      %p169 = scmp.le.s32.totalorder 1, %s14
      %p170 = scmp.lt.s32.totalorder %s14, 3
      %p171 = pnand %p169, %p170
      %p172 = pneg %p171
      // Predicated region
      $region25: #{tpu_custom_call.1} parent=5 // pred_check
        _
      $region26: #{tpu_custom_call.1} parent=5 // pred_check_branch
        %174 = sbr.rel (%p171) target = $region28
      $region27: #{tpu_custom_call.1} parent=5 // pred_region
        %s175 = ssub.s32 %s14, 1
        %s176 = sand.u32 %s41, 1
        %s177 = scalar_lea.sflag [#allocation5], %s176
        %s178 = sand.u32 %s41, 1
        %s179 = smul.addr %s178, 8
        %s180 = scalar_lea.vmem [#allocation4], %s179
        // Predicated region
        $region29: #{tpu_custom_call.1} parent=27 // pred_check
          %p181 = pneg %p54
        $region30: #{tpu_custom_call.1} parent=27 // pred_check_branch
          %183 = sbr.rel (%p181) target = $region32
        $region31: #{tpu_custom_call.1} parent=27 // pred_region
          %184 = dma.done %s177, 128
        $region32: #{tpu_custom_call.1} parent=27 // pred_fallthru
          _
        %s185 = sand.u32 %s69, 1
        %s186 = scalar_lea.sflag [#allocation7], %s185
        %s187 = sand.u32 %s69, 1
        %s188 = smul.addr %s187, 2
        %s189 = scalar_lea.vmem [#allocation6], %s188
        // Predicated region
        $region33: #{tpu_custom_call.1} parent=27 // pred_check
          %p190 = pneg %p82
        $region34: #{tpu_custom_call.1} parent=27 // pred_check_branch
          %192 = sbr.rel (%p190) target = $region36
        $region35: #{tpu_custom_call.1} parent=27 // pred_region
          %193 = dma.done %s186, 32
        $region36: #{tpu_custom_call.1} parent=27 // pred_fallthru
          _
        %s194 = sand.u32 %s41, 1
        %s195 = scalar_lea.sflag [#allocation5], %s194
        %s196 = sand.u32 %s41, 1
        %s197 = smul.addr %s196, 8
        %s198 = scalar_lea.vmem [#allocation4], %s197
        %p199 = pneg %p54
        %p200 = pneg %p51
        %s201 = sand.u32 %s69, 1
        %s202 = scalar_lea.sflag [#allocation7], %s201
        %s203 = sand.u32 %s69, 1
        %s204 = smul.addr %s203, 2
        %s205 = scalar_lea.vmem [#allocation6], %s204
        %p206 = pneg %p82
        %p207 = pneg %p79
        %p208 = pneg %p108
        %p209 = pneg %p105
        %p210 = scmp.lt.s32.totalorder %s23, 1
        %s211 = scalar_select %p210, %s23, 1
        %s212 = smul.addr %s211, 4
        %s213 = scalar_lea.vmem %s2, %s212
        %s214 = smul.u32 2, %s24
        %s215 = smul.u32 2, %s24
        %p216 = scmp.lt.s32.totalorder %s23, 1
        %s217 = scalar_select %p216, %s23, 1
        %s218 = smul.addr %s217, 4
        %s219 = scalar_lea.vmem %s2, %s218
        %p220 = scmp.eq.s32.totalorder %s24, 0
        // Predicated region
        $region37: #{tpu_custom_call.1} parent=27 // pred_check
          %p221 = pneg %p220
        $region38: #{tpu_custom_call.1} parent=27 // pred_check_branch
          %223 = sbr.rel (%p221) target = $region40
        $region39: #{tpu_custom_call.1} parent=27 // pred_region
          %vm224 = vcmask 3072
          %225 = vst.msk [vmem:[#allocation2] sm:$0xf] %vm224, 0.0
          %226 = vst.msk [vmem:[#allocation3] sm:$0xf] %vm224, 0.0
        $region40: #{tpu_custom_call.1} parent=27 // pred_fallthru
          _
        %v227 = vld [vmem:[%s180] sm:$0xff]
        %v228 = vld [vmem:[%s189] sm:$0x3]
        %v229 = vlaneseq
        %v230 = vshrl.u32 %v229, 7
        %s231 = smul.u32 %s24, 256
        %v232 = vlaneseq
        %v233 = vand.u32 %v232, 127
        %v234 = vadd.s32 %v233, 128
        %v235 = vstv %s231
        %v236 = vadd.s32 %v235, %v233
        %v237 = vadd.s32 %v235, %v234
        %vm238 = vcmp.lt.s32.totalorder %v236, 256
        %vm239 = vcmp.lt.s32.totalorder %v237, 256
        %v241 = vcombine.high %v227, %v227
        %vm243 = vcmask 1043456
        %v244 = vsel %vm243, %v227, -inf
        %v245 = vrot.slane %v244, 4
        %v246 = vmax.f32 %v244, %v245
        %v247 = vrot.slane %v246, 2
        %v248 = vmax.f32 %v246, %v247
        %v249 = vrot.slane %v248, 1
        %v250 = vmax.f32 %v248, %v249
        %v251 = vsel %vm243, %v241, -inf
        %v252 = vrot.slane %v251, 4
        %v253 = vmax.f32 %v251, %v252
        %v254 = vrot.slane %v253, 2
        %v255 = vmax.f32 %v253, %v254
        %v256 = vrot.slane %v255, 1
        %v257 = vmax.f32 %v255, %v256
        %v260 = vcombine.low %v250, %v257
        %vm262 = vcmp.eq.f32.partialorder %v227, %v260
        %v264 = vunpack.c.l.s4 839922192
        %v265 = vunpack.c.0.s8 %v264
        %v266 = vlaneseq
        %v267 = vshrl.u32 %v266, 7
        %v268 = vsub.s32 %v265, %v267
        %v269 = vrot.slane %v230, %v268
        %v270 = vsel %vm262, %v269, 4
        %v271 = vcombine.high %v270, %v270
        %v272 = vsel %vm243, %v270, 2147483647
        %v273 = vrot.slane %v272, 4
        %vm274 = vcmp.lt.s32.totalorder %v272, %v273
        %v275 = vsel %vm274, %v272, %v273
        %v276 = vrot.slane %v275, 2
        %vm277 = vcmp.lt.s32.totalorder %v275, %v276
        %v278 = vsel %vm277, %v275, %v276
        %v279 = vrot.slane %v278, 1
        %vm280 = vcmp.lt.s32.totalorder %v278, %v279
        %v281 = vsel %vm280, %v278, %v279
        %v282 = vsel %vm243, %v271, 2147483647
        %v283 = vrot.slane %v282, 4
        %vm284 = vcmp.lt.s32.totalorder %v282, %v283
        %v285 = vsel %vm284, %v282, %v283
        %v286 = vrot.slane %v285, 2
        %vm287 = vcmp.lt.s32.totalorder %v285, %v286
        %v288 = vsel %vm287, %v285, %v286
        %v289 = vrot.slane %v288, 1
        %vm290 = vcmp.lt.s32.totalorder %v288, %v289
        %v291 = vsel %vm290, %v288, %v289
        %vm292 = vcmp.eq.s32.totalorder %v230, %v281
        %vm293 = vcmp.eq.s32.totalorder %v230, %v291
        %v294 = vsel %vm238, 1, 0
        %v295 = vsel %vm239, 1, 0
        %vm296 = vcmp.eq.s32.totalorder %v294, 1
        %vm297 = vcmp.eq.s32.totalorder %v295, 1
        %vm298 = vmand %vm292, %vm296
        %vm299 = vmand %vm293, %vm297
        %v300 = vlaneseq
        %v301 = vshrl.u32 %v300, 7
        %v302 = vsub.s32 0, %v301
        %v303 = vrot.slane %v228, %v302
        %v304 = vlaneseq
        %v305 = vshrl.u32 %v304, 7
        %v306 = vsub.s32 1, %v305
        %v307 = vrot.slane %v228, %v306
        %vm308 = vcmp.eq.s32.totalorder %v230, %v303
        %vm309 = vcmp.eq.s32.totalorder %v230, %v307
        %vm310 = vmand %vm308, %vm296
        %vm311 = vmand %vm309, %vm297
        %vm312 = vmand %vm298, %vm310
        %vm313 = vmand %vm299, %vm311
        %v314 = vsel %vm312, 1, 0
        %v315 = vsel %vm313, 1, 0
        %v316 = vcvt.s32.f32 %v314
        %v317 = vcvt.s32.f32 %v315
        %v318 = vsel %vm243, %v316, 0.0
        %v319 = vsel %vm243, %v317, 0.0
        %v320 = vadd.f32 %v318, %v319
        %321 = vadd.xlane.f32.xlu0 %v320
        %v322 = vpop.xlane.xlu0 %321
        %v323 = vsel %vm298, 1, 0
        %v324 = vsel %vm299, 1, 0
        %v325 = vcvt.s32.f32 %v323
        %v326 = vcvt.s32.f32 %v324
        %v327 = vsel %vm243, %v325, 0.0
        %v328 = vsel %vm243, %v326, 0.0
        %v329 = vadd.f32 %v327, %v328
        %330 = vadd.xlane.f32.xlu0 %v329
        %v331 = vpop.xlane.xlu0 %330
        %v332 = vsel %vm310, 1, 0
        %v333 = vsel %vm311, 1, 0
        %v334 = vcvt.s32.f32 %v332
        %v335 = vcvt.s32.f32 %v333
        %v336 = vsel %vm243, %v334, 0.0
        %v337 = vsel %vm243, %v335, 0.0
        %v338 = vadd.f32 %v336, %v337
        %339 = vadd.xlane.f32.xlu0 %v338
        %v340 = vpop.xlane.xlu0 %339
        %v341 = vadd.f32 %v331, %v340
        %v342 = vld [vmem:[#allocation2] sm:$0xf]
        %v343 = vadd.f32 %v342, %v322
        %vm344 = vcmask 3072
        %345 = vst.msk [vmem:[#allocation2] sm:$0xf] %vm344, %v343
        %v346 = vld [vmem:[#allocation3] sm:$0xf]
        %v347 = vadd.f32 %v346, %v341
        %348 = vst.msk [vmem:[#allocation3] sm:$0xf] %vm344, %v347
        // Predicated region
        $region41: #{tpu_custom_call.1} parent=27 // pred_check
          %p349 = pneg %p220
        $region42: #{tpu_custom_call.1} parent=27 // pred_check_branch
          %351 = sbr.rel (%p349) target = $region44
        $region43: #{tpu_custom_call.1} parent=27 // pred_region
          %v352 = vld [vmem:[#allocation2] sm:$0xf]
          %v353 = vmul.f32 %v352, 2.0
          %v354 = vld [vmem:[#allocation3] sm:$0xf]
          %v355 = vmax.f32 %v354, 1.0
          %v356 = vrcp.pop %v355
          %v357 = vmul.f32 %v353, %v356
          %358 = vst.msk [vmem:[%s219] sm:$0xf] %vm344, %v357
        $region44: #{tpu_custom_call.1} parent=27 // pred_fallthru
          _
        %p359 = scmp.lt.s32.totalorder %s23, 1
        %s360 = scalar_select %p359, %s23, 1
        %s361 = smul.addr %s360, 4
        %s362 = scalar_lea.vmem %s2, %s361
        // Predicated region
        $region45: #{tpu_custom_call.1} parent=27 // pred_check
          %p363 = pneg %p105
        $region46: #{tpu_custom_call.1} parent=27 // pred_check_branch
          %365 = sbr.rel (%p363) target = $region48
        $region47: #{tpu_custom_call.1} parent=27 // pred_region
          _
        $region48: #{tpu_custom_call.1} parent=27 // pred_fallthru
          _
      $region28: #{tpu_custom_call.1} parent=5 // pred_fallthru
        _
      %p366 = scmp.le.s32.totalorder 2, %s14
      // Predicated region
      $region49: #{tpu_custom_call.1} parent=5 // pred_check
        %p367 = pneg %p366
      $region50: #{tpu_custom_call.1} parent=5 // pred_check_branch
        %369 = sbr.rel (%p367) target = $region52
      $region51: #{tpu_custom_call.1} parent=5 // pred_region
        %s370 = ssub.s32 %s14, 2
        // Predicated region
        $region53: #{tpu_custom_call.1} parent=51 // pred_check
          %p371 = pneg %p111
        $region54: #{tpu_custom_call.1} parent=51 // pred_check_branch
          %373 = sbr.rel (%p371) target = $region56
        $region55: #{tpu_custom_call.1} parent=51 // pred_region
          %p374 = scmp.lt.s32.totalorder %s25, 1
          %s375 = scalar_select %p374, %s25, 1
          %s376 = smul.addr %s375, 4
          %s377 = scalar_lea.vmem %s2, %s376
        $region56: #{tpu_custom_call.1} parent=51 // pred_fallthru
          _
      $region52: #{tpu_custom_call.1} parent=5 // pred_fallthru
        _
    $region6: #{tpu_custom_call.1} parent=1 // loop_footer
      %s18 = sadd.s32 1, %s14
    $region7: #{tpu_custom_call.1} parent=1 // loop_footer_branch
      %13 = sbr.rel target = $region3
    $region8: #{tpu_custom_call.1} parent=1 // loop_exit
      _
    %378 = vsyncpa [#allocation5], 1
    %s379 = scalar_lea.sflag [#allocation5], 1
    %380 = vsyncpa %s379, 1
    %381 = vsyncpa [#allocation7], 1
    %s382 = scalar_lea.sflag [#allocation7], 1
    %383 = vsyncpa %s382, 1

</llo_original>
